<compile_context>
chip_gen: v6e
topology: v6e:2x2x1
jax: 0.10.0
libtpu: 0.0.40
codegen_flags: <defaults>
</compile_context>

<pallas_src>
import functools
import math

import jax
import jax.numpy as jnp
from jax.experimental import pallas as pl
from jax.experimental.pallas import tpu as pltpu


def _round_up(x, m):
    return ((x + m - 1) // m) * m


def _hybrid_act_kernel(
    x_ref,        # (TB, OBS)   f32
    w1_ref,       # (OBS, 2H)   bf16   [wa1 | wc1]
    w2_ref,       # (2H, 2H)    bf16   block-diag [[wa2,0],[0,wc2]]
    b12_ref,      # (2, 2H)     f32    row0 = [ba1|bc1], row1 = [ba2|bc2]
    wh_ref,       # (2H, 128)   bf16   fused heads, output-ordered columns
    bh_ref,       # (1, 128)    f32    fused head biases (+ logp_cont constant)
    out_ref,      # (TB, 128)   f32    lane-dense merged output
    *, disc_dim, cont_dim,
):
    LOGP_LANE = 2 + cont_dim          # lane holding the total log-prob
    LOGIT_START = 3 + cont_dim        # logits parked in spare lanes

    b12 = b12_ref[...]
    x = x_ref[...].astype(jnp.bfloat16)

    # layer 1: tanh(x @ [wa1|wc1] + [ba1|bc1])  -> h1 = [ha1 | hc1], 128 lanes
    h1 = jnp.tanh(
        jnp.dot(x, w1_ref[...], preferred_element_type=jnp.float32) + b12[0:1, :])
    # layer 2: block-diagonal second layer -> h2 = [ha | hc], 128 lanes
    h2 = jnp.tanh(
        jnp.dot(h1.astype(jnp.bfloat16), w2_ref[...],
                preferred_element_type=jnp.float32) + b12[1:2, :])
    # fused heads, already in output lane order:
    #   [value | 0 (idx slot) | mean | logp_cont_const | logits | zeros]
    head = (jnp.dot(h2.astype(jnp.bfloat16), wh_ref[...],
                    preferred_element_type=jnp.float32) + bh_ref[...])

    lane = jax.lax.broadcasted_iota(jnp.int32, head.shape, 1)
    logit_mask = (lane >= LOGIT_START) & (lane < LOGIT_START + disc_dim)
    masked_logits = jnp.where(logit_mask, head, jnp.float32(-1e30))

    # discrete mode + its log-prob: log_softmax[argmax] == max - logsumexp
    m = jnp.max(masked_logits, axis=-1, keepdims=True)
    logp_disc = -jnp.log(jnp.sum(jnp.exp(masked_logits - m), axis=-1, keepdims=True))
    # first index attaining the max (matches torch.argmax tie-breaking)
    idx = jnp.min(jnp.where(masked_logits == m, lane - LOGIT_START, disc_dim),
                  axis=-1, keepdims=True)

    # lane-mask selects instead of concatenate: single unmasked lane-dense store
    out = jnp.where(lane <= LOGP_LANE, head, jnp.float32(0.0))   # zero logits/pad lanes
    out = jnp.where(lane == 1, idx.astype(jnp.float32), out)     # insert discrete action
    out = jnp.where(lane == LOGP_LANE, out + logp_disc, out)     # add discrete log-prob
    out_ref[...] = out


def pack_params(params, disc_dim, cont_dim, out_w=128):
    """One-time packing of the PyTorch-layout tensors into 5 fused slabs (bf16 weights)."""
    H = params["wa2"].shape[0]
    f32 = jnp.float32
    assert 3 + cont_dim + disc_dim <= out_w

    w1 = jnp.concatenate([params["wa1"], params["wc1"]], axis=1)            # (OBS, 2H)
    b1 = jnp.concatenate([params["ba1"], params["bc1"]], axis=1)            # (1, 2H)
    zH = jnp.zeros((H, H), f32)
    w2 = jnp.concatenate(
        [jnp.concatenate([params["wa2"], zH], axis=1),
         jnp.concatenate([zH, params["wc2"]], axis=1)], axis=0)             # (2H, 2H)
    b2 = jnp.concatenate([params["ba2"], params["bc2"]], axis=1)            # (1, 2H)
    b12 = jnp.concatenate([b1, b2], axis=0).astype(f32)                     # (2, 2H)

    # fused head columns, already in output lane order:
    #   [value(1) | idx-slot(1) | mean(cont) | logp-slot(1) | logits(disc) | zero pad]
    pad_w = out_w - (3 + cont_dim + disc_dim)
    wh_actor = jnp.concatenate(
        [jnp.zeros((H, 2), f32), params["wm"], jnp.zeros((H, 1), f32),
         params["wd"], jnp.zeros((H, pad_w), f32)], axis=1)
    wh_critic = jnp.concatenate(
        [params["wv"], jnp.zeros((H, out_w - 1), f32)], axis=1)
    wh = jnp.concatenate([wh_actor, wh_critic], axis=0)                     # (2H, 128)

    logp_cont_const = (-jnp.sum(params["logstd"])
                       - 0.5 * math.log(2.0 * math.pi) * cont_dim).astype(f32)
    bh = jnp.concatenate(
        [params["bv"], jnp.zeros((1, 1), f32), params["bm"],
         jnp.reshape(logp_cont_const, (1, 1)),
         params["bd"], jnp.zeros((1, pad_w), f32)], axis=1).astype(f32)     # (1, 128)

    return dict(w1=w1.astype(jnp.bfloat16), w2=w2.astype(jnp.bfloat16),
                b12=b12, wh=wh.astype(jnp.bfloat16), bh=bh)


def hybrid_policy_act(x, rnn_hxs, masks, packed, disc_dim, cont_dim, *, tb=512):
    """Deterministic act(): returns (value, action, action_log_probs, rnn_hxs)."""
    del masks  # non-recurrent base: masks unused
    B, OBS = x.shape
    H2 = packed["w2"].shape[0]          # 2 * hidden
    OUT_W = packed["wh"].shape[1]       # 128 lane-dense merged output width

    # batch tile: multiple of 8 sublanes; >= 512 for rollout-sized batches
    TB = min(tb, _round_up(B, 8))
    B_pad = _round_up(B, TB)
    if B_pad != B:
        x = jnp.pad(x, ((0, B_pad - B), (0, 0)))

    kernel = functools.partial(
        _hybrid_act_kernel, disc_dim=disc_dim, cont_dim=cont_dim)

    flops = 2 * B_pad * (OBS * H2 + H2 * H2 + H2 * OUT_W)
    transcendentals = B_pad * (2 * H2 + OUT_W)           # two tanh layers + exp/log row
    bytes_accessed = (int(x.size) * x.dtype.itemsize
                      + sum(int(v.size) * v.dtype.itemsize for v in packed.values())
                      + B_pad * OUT_W * 4)

    out = pl.pallas_call(
        kernel,
        out_shape=jax.ShapeDtypeStruct((B_pad, OUT_W), jnp.float32),
        grid=(B_pad // TB,),
        in_specs=[
            pl.BlockSpec((TB, OBS), lambda i: (i, 0)),       # x: tiled over batch
            pl.BlockSpec((OBS, H2), lambda i: (0, 0)),       # w1: resident
            pl.BlockSpec((H2, H2), lambda i: (0, 0)),        # w2: resident
            pl.BlockSpec((2, H2), lambda i: (0, 0)),         # b12: resident
            pl.BlockSpec((H2, OUT_W), lambda i: (0, 0)),     # wh: resident
            pl.BlockSpec((1, OUT_W), lambda i: (0, 0)),      # bh: resident
        ],
        out_specs=pl.BlockSpec((TB, OUT_W), lambda i: (i, 0)),
        compiler_params=pltpu.CompilerParams(
            dimension_semantics=("parallel",)),              # shard batch across TCs (v7x)
        cost_estimate=pl.CostEstimate(
            flops=flops, transcendentals=transcendentals,
            bytes_accessed=bytes_accessed),
    )(x, packed["w1"], packed["w2"], packed["b12"], packed["wh"], packed["bh"])

    value = out[:B, 0:1]
    action = out[:B, 1:2 + cont_dim]          # [discrete.float(), mean]
    logp = out[:B, 2 + cont_dim:3 + cont_dim]
    return value, action, logp, rnn_hxs


def make_params(key, obs_dim, hidden, disc_dim, cont_dim):
    """Deterministic synthetic parameters (shapes match MLPBase + heads)."""
    ks = jax.random.split(key, 9)
    scale = 0.1

    def w(k, shape):
        return (scale * jax.random.normal(k, shape)).astype(jnp.float32)

    return dict(
        # actor: Linear(obs_dim, hidden) -> tanh -> Linear(hidden, hidden) -> tanh
        wa1=w(ks[0], (obs_dim, hidden)), ba1=jnp.zeros((1, hidden), jnp.float32),
        wa2=w(ks[1], (hidden, hidden)),  ba2=jnp.zeros((1, hidden), jnp.float32),
        # critic: same structure
        wc1=w(ks[2], (obs_dim, hidden)), bc1=jnp.zeros((1, hidden), jnp.float32),
        wc2=w(ks[3], (hidden, hidden)),  bc2=jnp.zeros((1, hidden), jnp.float32),
        # critic_linear: Linear(hidden, 1)
        wv=w(ks[4], (hidden, 1)), bv=jnp.zeros((1, 1), jnp.float32),
        # Categorical: Linear(hidden, disc_dim)
        # (unit gain here so the synthetic logit gaps dwarf bf16 rounding; argmax stable)
        wd=w(ks[5], (hidden, disc_dim)), bd=jnp.zeros((1, disc_dim), jnp.float32),
        # DiagGaussian mean head: Linear(hidden, cont_dim)
        wm=w(ks[6], (hidden, cont_dim)), bm=jnp.zeros((1, cont_dim), jnp.float32),
        # DiagGaussian logstd (AddBias); nonzero here to exercise the log-prob path
        logstd=w(ks[7], (cont_dim,)),
    )


def _reference_act(x, params):
    """Pure-JAX f32 reference of the deterministic act() path (for sanity check)."""
    hc = jnp.tanh(x @ params["wc1"] + params["bc1"])
    hc = jnp.tanh(hc @ params["wc2"] + params["bc2"])
    ha = jnp.tanh(x @ params["wa1"] + params["ba1"])
    ha = jnp.tanh(ha @ params["wa2"] + params["ba2"])
    value = hc @ params["wv"] + params["bv"]
    logits = ha @ params["wd"] + params["bd"]
    mean = ha @ params["wm"] + params["bm"]
    idx = jnp.argmax(logits, axis=-1, keepdims=True)
    logp_disc = jnp.take_along_axis(jax.nn.log_softmax(logits, -1), idx, axis=-1)
    logp_cont = (-jnp.sum(params["logstd"])
                 - 0.5 * math.log(2.0 * math.pi) * mean.shape[-1]) * jnp.ones_like(logp_disc)
    action = jnp.concatenate([idx.astype(jnp.float32), mean], axis=-1)
    return value, action, logp_disc + logp_cont


if __name__ == "__main__":
    B, OBS, HID = 2, 16, 64          # batch, 1-D obs dim (-> MLPBase), hidden_size
    DISC, CONT = 4, 3                # discrete_action_dim, continuous_action_shape

    key = jax.random.PRNGKey(0)
    kx, kp = jax.random.split(key)
    x = jax.random.normal(kx, (B, OBS), dtype=jnp.float32)
    rnn_hxs = jnp.zeros((B, 1), jnp.float32)   # non-recurrent: hidden state size 1
    masks = jnp.ones((B, 1), jnp.float32)
    params = make_params(kp, OBS, HID, DISC, CONT)
    packed = pack_params(params, DISC, CONT)   # one-time weight packing (amortized)

    value, action, logp, rnn_hxs_out = hybrid_policy_act(
        x, rnn_hxs, masks, packed, DISC, CONT)
    jax.block_until_ready((value, action, logp, rnn_hxs_out))

    # sanity-check against pure-JAX f32 reference (bf16 weights/activations in the
    # kernel, f32 accumulation -> loosened tolerance)
    v_ref, a_ref, lp_ref = _reference_act(x, params)
    assert jnp.allclose(value, v_ref, atol=2e-2), "value mismatch"
    assert jnp.allclose(action, a_ref, atol=2e-2), "action mismatch"
    assert jnp.allclose(logp, lp_ref, atol=2e-2), "log_prob mismatch"
    assert value.shape == (B, 1) and action.shape == (B, 1 + CONT) and logp.shape == (B, 1)

    print("KERNEL_OK")
</pallas_src>

<mosaic_0001>
module attributes {stable_mosaic.version = 11 : i64} {
  func.func @_hybrid_act_kernel(%arg0: i32, %arg1: memref<8x16xf32, #tpu.memory_space<vmem>>, %arg2: memref<16x128xbf16, #tpu.memory_space<vmem>>, %arg3: memref<128x128xbf16, #tpu.memory_space<vmem>>, %arg4: memref<2x128xf32, #tpu.memory_space<vmem>>, %arg5: memref<128x128xbf16, #tpu.memory_space<vmem>>, %arg6: memref<1x128xf32, #tpu.memory_space<vmem>>, %arg7: memref<8x128xf32, #tpu.memory_space<vmem>>) attributes {dimension_semantics = [#tpu.dimension_semantics<parallel>], iteration_bounds = array<i64: 1>, scalar_prefetch = 0 : i64, scratch_operands = 0 : i64, tpu.core_type = #tpu.core_type<tc>, window_params = [{transform_indices = @transform_0, window_bounds = array<i64: 8, 16>}, {pipeline_mode = #tpu.pipeline_mode<synchronous>, transform_indices = @transform_1, window_bounds = array<i64: 16, 128>}, {pipeline_mode = #tpu.pipeline_mode<synchronous>, transform_indices = @transform_2, window_bounds = array<i64: 128, 128>}, {pipeline_mode = #tpu.pipeline_mode<synchronous>, transform_indices = @transform_3, window_bounds = array<i64: 2, 128>}, {pipeline_mode = #tpu.pipeline_mode<synchronous>, transform_indices = @transform_4, window_bounds = array<i64: 128, 128>}, {pipeline_mode = #tpu.pipeline_mode<synchronous>, transform_indices = @transform_5, window_bounds = array<i64: 1, 128>}, {transform_indices = @transform_6, window_bounds = array<i64: 8, 128>}]} {
    %c0 = arith.constant 0 : index
    %c0_0 = arith.constant 0 : index
    %0 = vector.load %arg4[%c0, %c0_0] : memref<2x128xf32, #tpu.memory_space<vmem>>, vector<2x128xf32>
    %c0_1 = arith.constant 0 : index
    %c0_2 = arith.constant 0 : index
    %1 = vector.load %arg1[%c0_1, %c0_2] : memref<8x16xf32, #tpu.memory_space<vmem>>, vector<8x16xf32>
    %2 = arith.truncf %1 : vector<8x16xf32> to vector<8x16xbf16>
    %c0_3 = arith.constant 0 : index
    %c0_4 = arith.constant 0 : index
    %3 = vector.load %arg2[%c0_3, %c0_4] : memref<16x128xbf16, #tpu.memory_space<vmem>>, vector<16x128xbf16>
    %cst = arith.constant dense<0.000000e+00> : vector<8x128xf32>
    %4 = tpu.matmul %2, %3, %cst {dimension_numbers = #tpu.dot_dimension_numbers<[1], [0], [0], [1], [0, 0, 1, 1], [], []>} : vector<8x16xbf16>, vector<16x128xbf16>, vector<8x128xf32> -> vector<8x128xf32>
    %5 = vector.extract_strided_slice %0 {offsets = [0, 0], sizes = [1, 128], strides = [1, 1]} : vector<2x128xf32> to vector<1x128xf32>
    %6 = vector.broadcast %5 : vector<1x128xf32> to vector<8x128xf32>
    %7 = arith.addf %4, %6 : vector<8x128xf32>
    %8 = math.tanh %7 : vector<8x128xf32>
    %9 = arith.truncf %8 : vector<8x128xf32> to vector<8x128xbf16>
    %c0_5 = arith.constant 0 : index
    %c0_6 = arith.constant 0 : index
    %10 = vector.load %arg3[%c0_5, %c0_6] : memref<128x128xbf16, #tpu.memory_space<vmem>>, vector<128x128xbf16>
    %cst_7 = arith.constant dense<0.000000e+00> : vector<8x128xf32>
    %11 = tpu.matmul %9, %10, %cst_7 {dimension_numbers = #tpu.dot_dimension_numbers<[1], [0], [0], [1], [0, 0, 1, 1], [], []>} : vector<8x128xbf16>, vector<128x128xbf16>, vector<8x128xf32> -> vector<8x128xf32>
    %12 = vector.extract_strided_slice %0 {offsets = [1, 0], sizes = [1, 128], strides = [1, 1]} : vector<2x128xf32> to vector<1x128xf32>
    %13 = vector.broadcast %12 : vector<1x128xf32> to vector<8x128xf32>
    %14 = arith.addf %11, %13 : vector<8x128xf32>
    %15 = math.tanh %14 : vector<8x128xf32>
    %16 = arith.truncf %15 : vector<8x128xf32> to vector<8x128xbf16>
    %c0_8 = arith.constant 0 : index
    %c0_9 = arith.constant 0 : index
    %17 = vector.load %arg5[%c0_8, %c0_9] : memref<128x128xbf16, #tpu.memory_space<vmem>>, vector<128x128xbf16>
    %cst_10 = arith.constant dense<0.000000e+00> : vector<8x128xf32>
    %18 = tpu.matmul %16, %17, %cst_10 {dimension_numbers = #tpu.dot_dimension_numbers<[1], [0], [0], [1], [0, 0, 1, 1], [], []>} : vector<8x128xbf16>, vector<128x128xbf16>, vector<8x128xf32> -> vector<8x128xf32>
    %c0_11 = arith.constant 0 : index
    %c0_12 = arith.constant 0 : index
    %19 = vector.load %arg6[%c0_11, %c0_12] : memref<1x128xf32, #tpu.memory_space<vmem>>, vector<1x128xf32>
    %20 = vector.broadcast %19 : vector<1x128xf32> to vector<8x128xf32>
    %21 = arith.addf %18, %20 : vector<8x128xf32>
    %22 = tpu.iota {dimensions = array<i32: 1>} : vector<8x128xi32>
    %c6_i32 = arith.constant 6 : i32
    %23 = vector.broadcast %c6_i32 : i32 to vector<8x128xi32>
    %24 = arith.cmpi sge, %22, %23 : vector<8x128xi32>
    %c10_i32 = arith.constant 10 : i32
    %25 = vector.broadcast %c10_i32 : i32 to vector<8x128xi32>
    %26 = arith.cmpi slt, %22, %25 : vector<8x128xi32>
    %27 = arith.andi %24, %26 : vector<8x128xi1>
    %cst_13 = arith.constant -1.000000e+30 : f32
    %28 = vector.broadcast %cst_13 : f32 to vector<8x128xf32>
    %29 = arith.select %27, %21, %28 : vector<8x128xi1>, vector<8x128xf32>
    %cst_14 = arith.constant dense<0xFF800000> : vector<8xf32>
    %30 = vector.multi_reduction <maximumf>, %29, %cst_14 [1] : vector<8x128xf32> to vector<8xf32>
    %31 = vector.shape_cast %30 : vector<8xf32> to vector<8x1xf32>
    %32 = vector.broadcast %31 : vector<8x1xf32> to vector<8x128xf32>
    %33 = arith.subf %29, %32 : vector<8x128xf32>
    %34 = math.exp %33 : vector<8x128xf32>
    %cst_15 = arith.constant dense<0.000000e+00> : vector<8xf32>
    %35 = vector.multi_reduction <add>, %34, %cst_15 [1] : vector<8x128xf32> to vector<8xf32>
    %36 = vector.shape_cast %35 : vector<8xf32> to vector<8x1xf32>
    %37 = math.log %36 : vector<8x1xf32>
    %cst_16 = arith.constant 0.000000e+00 : f32
    %38 = vector.broadcast %cst_16 : f32 to vector<8x1xf32>
    %39 = arith.subf %38, %37 : vector<8x1xf32>
    %40 = vector.broadcast %31 : vector<8x1xf32> to vector<8x128xf32>
    %41 = arith.cmpf oeq, %29, %40 : vector<8x128xf32>
    %c6_i32_17 = arith.constant 6 : i32
    %42 = vector.broadcast %c6_i32_17 : i32 to vector<8x128xi32>
    %43 = arith.subi %22, %42 : vector<8x128xi32>
    %c4_i32 = arith.constant 4 : i32
    %44 = vector.broadcast %c4_i32 : i32 to vector<8x128xi32>
    %45 = arith.select %41, %43, %44 : vector<8x128xi1>, vector<8x128xi32>
    %cst_18 = arith.constant dense<2147483647> : vector<8xi32>
    %46 = vector.multi_reduction <minsi>, %45, %cst_18 [1] : vector<8x128xi32> to vector<8xi32>
    %47 = vector.shape_cast %46 : vector<8xi32> to vector<8x1xi32>
    %c5_i32 = arith.constant 5 : i32
    %48 = vector.broadcast %c5_i32 : i32 to vector<8x128xi32>
    %49 = arith.cmpi sle, %22, %48 : vector<8x128xi32>
    %cst_19 = arith.constant 0.000000e+00 : f32
    %50 = vector.broadcast %cst_19 : f32 to vector<8x128xf32>
    %51 = arith.select %49, %21, %50 : vector<8x128xi1>, vector<8x128xf32>
    %c1_i32 = arith.constant 1 : i32
    %52 = vector.broadcast %c1_i32 : i32 to vector<8x128xi32>
    %53 = arith.cmpi eq, %22, %52 : vector<8x128xi32>
    %54 = arith.sitofp %47 : vector<8x1xi32> to vector<8x1xf32>
    %55 = vector.shape_cast %54 : vector<8x1xf32> to vector<8x1xf32>
    %56 = vector.broadcast %55 : vector<8x1xf32> to vector<8x128xf32>
    %57 = arith.select %53, %56, %51 : vector<8x128xi1>, vector<8x128xf32>
    %c5_i32_20 = arith.constant 5 : i32
    %58 = vector.broadcast %c5_i32_20 : i32 to vector<8x128xi32>
    %59 = arith.cmpi eq, %22, %58 : vector<8x128xi32>
    %60 = vector.broadcast %39 : vector<8x1xf32> to vector<8x128xf32>
    %61 = arith.addf %57, %60 : vector<8x128xf32>
    %62 = arith.select %59, %61, %57 : vector<8x128xi1>, vector<8x128xf32>
    %c0_21 = arith.constant 0 : index
    %c0_22 = arith.constant 0 : index
    %63 = vector.load %arg7[%c0_21, %c0_22] : memref<8x128xf32, #tpu.memory_space<vmem>>, vector<8x128xf32>
    tpu.vector_store %arg7[%c0_21, %c0_22], %62 {strides = array<i32>} : memref<8x128xf32, #tpu.memory_space<vmem>>, vector<8x128xf32>,
    return
  }
  func.func @transform_0(%arg0: i32) -> (i32, i32) {
    %c0_i32 = arith.constant 0 : i32
    %c0_i32_0 = arith.constant 0 : i32
    return %arg0, %c0_i32 : i32, i32
  }
  func.func @transform_1(%arg0: i32) -> (i32, i32) {
    %c0_i32 = arith.constant 0 : i32
    %c0_i32_0 = arith.constant 0 : i32
    %c0_i32_1 = arith.constant 0 : i32
    return %c0_i32, %c0_i32_0 : i32, i32
  }
  func.func @transform_2(%arg0: i32) -> (i32, i32) {
    %c0_i32 = arith.constant 0 : i32
    %c0_i32_0 = arith.constant 0 : i32
    %c0_i32_1 = arith.constant 0 : i32
    return %c0_i32, %c0_i32_0 : i32, i32
  }
  func.func @transform_3(%arg0: i32) -> (i32, i32) {
    %c0_i32 = arith.constant 0 : i32
    %c0_i32_0 = arith.constant 0 : i32
    %c0_i32_1 = arith.constant 0 : i32
    return %c0_i32, %c0_i32_0 : i32, i32
  }
  func.func @transform_4(%arg0: i32) -> (i32, i32) {
    %c0_i32 = arith.constant 0 : i32
    %c0_i32_0 = arith.constant 0 : i32
    %c0_i32_1 = arith.constant 0 : i32
    return %c0_i32, %c0_i32_0 : i32, i32
  }
  func.func @transform_5(%arg0: i32) -> (i32, i32) {
    %c0_i32 = arith.constant 0 : i32
    %c0_i32_0 = arith.constant 0 : i32
    %c0_i32_1 = arith.constant 0 : i32
    return %c0_i32, %c0_i32_0 : i32, i32
  }
  func.func @transform_6(%arg0: i32) -> (i32, i32) {
    %c0_i32 = arith.constant 0 : i32
    %c0_i32_0 = arith.constant 0 : i32
    return %arg0, %c0_i32 : i32, i32
  }
}

</mosaic_0001>

<llo_original>
// kernel: tpu_custom_call.1
$region0: #{tpu_custom_call.1}
  #allocation0 [shape = 'u32[]', space=smem, size = 0x4, offset = 0x4, fixed_abs, tag = 'smem constant byte address 0x4 - core index']
  #allocation1 [shape = 'u32[144,128]{1,0:T(1,128)}', space=vmem, size = 0x12000, scoped, tag = 'internal scratch']
  %s0 = inlined_call_operand.hbm [shape: f32[8,16], index: 0, kind: input, shape index: {}]
  %s1 = inlined_call_operand.hbm [shape: bf16[16,128], index: 1, kind: input, shape index: {}]
  %s2 = inlined_call_operand.hbm [shape: bf16[128,128], index: 2, kind: input, shape index: {}]
  %s3 = inlined_call_operand.vmem [shape: f32[2,128], index: 3, kind: input, shape index: {}]
  %s4 = inlined_call_operand.hbm [shape: bf16[128,128], index: 4, kind: input, shape index: {}]
  %s5 = inlined_call_operand.vmem [shape: f32[1,128], index: 5, kind: input, shape index: {}]
  %s6 = inlined_call_operand.hbm [shape: f32[8,128], index: 6, kind: output, shape index: {}]
  %s7 = sld [smem:[#allocation0]]
  $region50: #{tpu_custom_call.1} parent=0
    _
  %s9 = ssub.s32 1, %s7
  %s10 = scalar_select 0, %s9, %s7
  $region1: #{tpu_custom_call.1} parent=0
    #allocation2 [shape = 'u8[4096]{0}', space=vmem, size = 0x1000, scoped, tag = 'input window, operand 0, single buffered']
    #allocation3 [shape = 's32[1]{0}', space=sflag, size = 0x4, scoped, tag = 'scoped memory for tpu_custom_call.1']
    #allocation4 [shape = 's32[1]{0}', space=sflag, size = 0x4, scoped, tag = 'scoped memory for tpu_custom_call.1']
    #allocation5 [shape = 'u8[4096]{0}', space=vmem, size = 0x1000, scoped, tag = 'input window, operand 1, single buffered']
    #allocation6 [shape = 's32[1]{0}', space=sflag, size = 0x4, scoped, tag = 'scoped memory for tpu_custom_call.1']
    #allocation7 [shape = 'u8[32768]{0}', space=vmem, size = 0x8000, scoped, tag = 'input window, operand 2, single buffered']
    #allocation8 [shape = 'u8[32768]{0}', space=vmem, size = 0x8000, scoped, tag = 'input window, operand 4, single buffered']
    #allocation9 [shape = 's32[1]{0}', space=sflag, size = 0x4, scoped, tag = 'scoped memory for tpu_custom_call.1']
    #allocation10 [shape = 'u8[4096]{0}', space=vmem, size = 0x1000, scoped, tag = 'output window, operand 0, single buffered']
    %11 = vsyncpa [#allocation3], 0
    %12 = vsyncpa [#allocation6], 0
    %13 = vsyncpa [#allocation9], 0
    %14 = vsyncpa [#allocation4], 0
    // Predicated region
    $region2: #{tpu_custom_call.1} parent=1 // pred_check
      _
    $region3: #{tpu_custom_call.1} parent=1 // pred_check_branch
      %16 = sbr.rel (0) target = $region5
    $region4: #{tpu_custom_call.1} parent=1 // pred_region
      %s18 = ssub.s32 128, 128
      %19 = vsyncadd [#allocation3], %s18
      %s21 = sshll.u32 [#allocation2], 4
      %s22 = int_to_ptr.vmem [resolvable:$true] %s21
      %24 = dma.hbm_to_vmem [thread:$0]  %s0, 128, %s22, [#allocation3]
    $region5: #{tpu_custom_call.1} parent=1 // pred_fallthru
      _
    // Predicated region
    $region6: #{tpu_custom_call.1} parent=1 // pred_check
      _
    $region7: #{tpu_custom_call.1} parent=1 // pred_check_branch
      %26 = sbr.rel (0) target = $region9
    $region8: #{tpu_custom_call.1} parent=1 // pred_region
      %s28 = ssub.s32 128, 128
      %29 = vsyncadd [#allocation6], %s28
      %s30 = sshll.u32 [#allocation5], 4
      %s31 = int_to_ptr.vmem [resolvable:$true] %s30
      %36 = dma.hbm_to_vmem [thread:$0]  %s1, 128, %s31, [#allocation6], 64, 64, 4
    $region9: #{tpu_custom_call.1} parent=1 // pred_fallthru
      _
    // Predicated region
    $region10: #{tpu_custom_call.1} parent=1 // pred_check
      _
    $region11: #{tpu_custom_call.1} parent=1 // pred_check_branch
      %38 = sbr.rel (0) target = $region13
    $region12: #{tpu_custom_call.1} parent=1 // pred_region
      %s40 = ssub.s32 1024, 1024
      %41 = vsyncadd [#allocation6], %s40
      %s42 = sshll.u32 [#allocation7], 4
      %s43 = int_to_ptr.vmem [resolvable:$true] %s42
      %48 = dma.hbm_to_vmem [thread:$0]  %s2, 1024, %s43, [#allocation6], 64, 64, 4
    $region13: #{tpu_custom_call.1} parent=1 // pred_fallthru
      _
    // Predicated region
    $region14: #{tpu_custom_call.1} parent=1 // pred_check
      _
    $region15: #{tpu_custom_call.1} parent=1 // pred_check_branch
      %50 = sbr.rel (0) target = $region17
    $region16: #{tpu_custom_call.1} parent=1 // pred_region
      _
    $region17: #{tpu_custom_call.1} parent=1 // pred_fallthru
      _
    // Predicated region
    $region18: #{tpu_custom_call.1} parent=1 // pred_check
      _
    $region19: #{tpu_custom_call.1} parent=1 // pred_check_branch
      %52 = sbr.rel (0) target = $region21
    $region20: #{tpu_custom_call.1} parent=1 // pred_region
      %s54 = ssub.s32 1024, 1024
      %55 = vsyncadd [#allocation9], %s54
      %s56 = sshll.u32 [#allocation8], 4
      %s57 = int_to_ptr.vmem [resolvable:$true] %s56
      %62 = dma.hbm_to_vmem [thread:$0]  %s4, 1024, %s57, [#allocation9], 64, 64, 4
    $region21: #{tpu_custom_call.1} parent=1 // pred_fallthru
      _
    // Predicated region
    $region22: #{tpu_custom_call.1} parent=1 // pred_check
      _
    $region23: #{tpu_custom_call.1} parent=1 // pred_check_branch
      %64 = sbr.rel (0) target = $region25
    $region24: #{tpu_custom_call.1} parent=1 // pred_region
      _
    $region25: #{tpu_custom_call.1} parent=1 // pred_fallthru
      _
    // Predicated region
    $region26: #{tpu_custom_call.1} parent=1 // pred_check
      _
    $region27: #{tpu_custom_call.1} parent=1 // pred_check_branch
      %66 = sbr.rel (0) target = $region29
    $region28: #{tpu_custom_call.1} parent=1 // pred_region
      %67 = dma.done [#allocation3], 128
    $region29: #{tpu_custom_call.1} parent=1 // pred_fallthru
      _
    // Predicated region
    $region30: #{tpu_custom_call.1} parent=1 // pred_check
      _
    $region31: #{tpu_custom_call.1} parent=1 // pred_check_branch
      %69 = sbr.rel (0) target = $region33
    $region32: #{tpu_custom_call.1} parent=1 // pred_region
      %70 = dma.done [#allocation6], 128
    $region33: #{tpu_custom_call.1} parent=1 // pred_fallthru
      _
    // Predicated region
    $region34: #{tpu_custom_call.1} parent=1 // pred_check
      _
    $region35: #{tpu_custom_call.1} parent=1 // pred_check_branch
      %72 = sbr.rel (0) target = $region37
    $region36: #{tpu_custom_call.1} parent=1 // pred_region
      %73 = dma.done [#allocation6], 1024
    $region37: #{tpu_custom_call.1} parent=1 // pred_fallthru
      _
    // Predicated region
    $region38: #{tpu_custom_call.1} parent=1 // pred_check
      _
    $region39: #{tpu_custom_call.1} parent=1 // pred_check_branch
      %75 = sbr.rel (0) target = $region41
    $region40: #{tpu_custom_call.1} parent=1 // pred_region
      %76 = dma.done [#allocation9], 1024
    $region41: #{tpu_custom_call.1} parent=1 // pred_fallthru
      _
    %v78 = vld [vmem:[%s3] sm:$0x3]
    %v79 = vld [vmem:[#allocation2] sm:$0xff]
    %v80 = vpack.c.bf16 %v79, %v79
    %v81 = vld [vmem:[#allocation5] sm:$0xf]
    %v82 = vld [vmem:[#allocation5 + $0x4] sm:$0xf]
    %v83 = vlaneseq
    %v84 = vshrl.u32 %v83, 7
    %v85 = vsub.s32 0, %v84
    %v86 = vrot.slane %v78, %v85
    %v89 = vunpack.c.l.b16 %v81
    %v90 = vunpack.c.l.b16 %v82
    %v91 = vpack.c.b16 %v90, %v89
    %vm93 = vcmask 130048
    %v95 = vsel %vm93, %v80, 0
    %97 = vmatprep.subr.bf16.mxu0 0
    %98 = vmatpush1.bf16.msra.mxu0 0
    %99 = vmatprep.subr.bf16.mxu0 0
    %100 = vmatpush1.bf16.msra.mxu0 0
    %101 = vmatprep.subr.bf16.mxu0 0
    %102 = vmatpush1.bf16.msra.mxu0 0
    %103 = vmatprep.subr.bf16.mxu0 0
    %104 = vmatpush1.bf16.msra.mxu0 0
    %105 = vmatprep.subr.bf16.mxu0 0
    %106 = vmatpush1.bf16.msra.mxu0 0
    %107 = vmatprep.subr.bf16.mxu0 0
    %108 = vmatpush1.bf16.msra.mxu0 0
    %109 = vmatprep.subr.bf16.mxu0 0
    %110 = vmatpush1.bf16.msra.mxu0 0
    %111 = vmatprep.subr.bf16.mxu0 0
    %112 = vmatpush1.bf16.msra.mxu0 %v91
    %113 = vmatprep.subr.bf16.mxu0 0
    %114 = vmatpush2.bf16.msra.mxu0 0
    %115 = vmatprep.subr.bf16.mxu0 0
    %116 = vmatpush2.bf16.msra.mxu0 0
    %117 = vmatprep.subr.bf16.mxu0 0
    %118 = vmatpush2.bf16.msra.mxu0 0
    %119 = vmatprep.subr.bf16.mxu0 0
    %120 = vmatpush2.bf16.msra.mxu0 0
    %121 = vmatprep.subr.bf16.mxu0 0
    %122 = vmatpush2.bf16.msra.mxu0 0
    %123 = vmatprep.subr.bf16.mxu0 0
    %124 = vmatpush2.bf16.msra.mxu0 0
    %125 = vmatprep.subr.bf16.mxu0 0
    %126 = vmatpush2.bf16.msra.mxu0 0
    %127 = vmatprep.subr.bf16.mxu0 0
    %128 = vmatpush2.bf16.msra.mxu0 0
    %129 = vmatprep.mubr.bf16.mxu0 0
    %130 = vmatmul.mubr.bf16.gmra.mxu0 %v95
    %v131 = vpop.f32.mrf.mxu0
    %v132 = vadd.f32 %v86, %v131
    %v133 = vpop.f32.mrf.mxu0
    %v134 = vpop.f32.mrf.mxu0
    %v135 = vpop.f32.mrf.mxu0
    %136 = vdwg.mxu0
    %v137 = vtanh.pop %v132
    %v138 = vpack.c.bf16 %v137, %v137
    %v139 = vld [vmem:[#allocation7] sm:$0xf]
    %v140 = vld [vmem:[#allocation7 + $0x4] sm:$0xf]
    %v141 = vld [vmem:[#allocation7 + $0x8] sm:$0xf]
    %v142 = vld [vmem:[#allocation7 + $0xc] sm:$0xf]
    %v143 = vld [vmem:[#allocation7 + $0x10] sm:$0xf]
    %v144 = vld [vmem:[#allocation7 + $0x14] sm:$0xf]
    %v145 = vld [vmem:[#allocation7 + $0x18] sm:$0xf]
    %v146 = vld [vmem:[#allocation7 + $0x1c] sm:$0xf]
    %v147 = vld [vmem:[#allocation7 + $0x20] sm:$0xf]
    %v148 = vld [vmem:[#allocation7 + $0x24] sm:$0xf]
    %v149 = vld [vmem:[#allocation7 + $0x28] sm:$0xf]
    %v150 = vld [vmem:[#allocation7 + $0x2c] sm:$0xf]
    %v151 = vld [vmem:[#allocation7 + $0x30] sm:$0xf]
    %v152 = vld [vmem:[#allocation7 + $0x34] sm:$0xf]
    %v153 = vld [vmem:[#allocation7 + $0x38] sm:$0xf]
    %v154 = vld [vmem:[#allocation7 + $0x3c] sm:$0xf]
    %v155 = vlaneseq
    %v156 = vshrl.u32 %v155, 7
    %v157 = vsub.s32 1, %v156
    %v158 = vrot.slane %v78, %v157
    %v175 = vunpack.c.l.b16 %v139
    %v176 = vunpack.c.l.b16 %v140
    %v177 = vunpack.c.l.b16 %v141
    %v178 = vunpack.c.l.b16 %v142
    %v179 = vunpack.c.l.b16 %v143
    %v180 = vunpack.c.l.b16 %v144
    %v181 = vunpack.c.l.b16 %v145
    %v182 = vunpack.c.l.b16 %v146
    %v183 = vunpack.c.l.b16 %v147
    %v184 = vunpack.c.l.b16 %v148
    %v185 = vunpack.c.l.b16 %v149
    %v186 = vunpack.c.l.b16 %v150
    %v187 = vunpack.c.l.b16 %v151
    %v188 = vunpack.c.l.b16 %v152
    %v189 = vunpack.c.l.b16 %v153
    %v190 = vunpack.c.l.b16 %v154
    %v191 = vpack.c.b16 %v176, %v175
    %v192 = vpack.c.b16 %v178, %v177
    %v193 = vpack.c.b16 %v180, %v179
    %v194 = vpack.c.b16 %v182, %v181
    %v195 = vpack.c.b16 %v184, %v183
    %v196 = vpack.c.b16 %v186, %v185
    %v197 = vpack.c.b16 %v188, %v187
    %v198 = vpack.c.b16 %v190, %v189
    %207 = vmatprep.subr.bf16.mxu0 0
    %208 = vmatpush1.bf16.msra.mxu0 %v198
    %209 = vmatprep.subr.bf16.mxu0 0
    %210 = vmatpush1.bf16.msra.mxu0 %v197
    %211 = vmatprep.subr.bf16.mxu0 0
    %212 = vmatpush1.bf16.msra.mxu0 %v196
    %213 = vmatprep.subr.bf16.mxu0 0
    %214 = vmatpush1.bf16.msra.mxu0 %v195
    %215 = vmatprep.subr.bf16.mxu0 0
    %216 = vmatpush1.bf16.msra.mxu0 %v194
    %217 = vmatprep.subr.bf16.mxu0 0
    %218 = vmatpush1.bf16.msra.mxu0 %v193
    %219 = vmatprep.subr.bf16.mxu0 0
    %220 = vmatpush1.bf16.msra.mxu0 %v192
    %221 = vmatprep.subr.bf16.mxu0 0
    %222 = vmatpush1.bf16.msra.mxu0 %v191
    %223 = vmatprep.subr.bf16.mxu0 0
    %224 = vmatpush2.bf16.msra.mxu0 0
    %225 = vmatprep.subr.bf16.mxu0 0
    %226 = vmatpush2.bf16.msra.mxu0 0
    %227 = vmatprep.subr.bf16.mxu0 0
    %228 = vmatpush2.bf16.msra.mxu0 0
    %229 = vmatprep.subr.bf16.mxu0 0
    %230 = vmatpush2.bf16.msra.mxu0 0
    %231 = vmatprep.subr.bf16.mxu0 0
    %232 = vmatpush2.bf16.msra.mxu0 0
    %233 = vmatprep.subr.bf16.mxu0 0
    %234 = vmatpush2.bf16.msra.mxu0 0
    %235 = vmatprep.subr.bf16.mxu0 0
    %236 = vmatpush2.bf16.msra.mxu0 0
    %237 = vmatprep.subr.bf16.mxu0 0
    %238 = vmatpush2.bf16.msra.mxu0 0
    %239 = vmatprep.mubr.bf16.mxu0 0
    %240 = vmatmul.mubr.bf16.gmra.mxu0 %v138
    %v241 = vpop.f32.mrf.mxu0
    %v242 = vadd.f32 %v158, %v241
    %v243 = vpop.f32.mrf.mxu0
    %v244 = vpop.f32.mrf.mxu0
    %v245 = vpop.f32.mrf.mxu0
    %246 = vdwg.mxu0
    %v247 = vtanh.pop %v242
    %v248 = vpack.c.bf16 %v247, %v247
    %v249 = vld [vmem:[#allocation8] sm:$0xf]
    %v250 = vld [vmem:[#allocation8 + $0x4] sm:$0xf]
    %v251 = vld [vmem:[#allocation8 + $0x8] sm:$0xf]
    %v252 = vld [vmem:[#allocation8 + $0xc] sm:$0xf]
    %v253 = vld [vmem:[#allocation8 + $0x10] sm:$0xf]
    %v254 = vld [vmem:[#allocation8 + $0x14] sm:$0xf]
    %v255 = vld [vmem:[#allocation8 + $0x18] sm:$0xf]
    %v256 = vld [vmem:[#allocation8 + $0x1c] sm:$0xf]
    %v257 = vld [vmem:[#allocation8 + $0x20] sm:$0xf]
    %v258 = vld [vmem:[#allocation8 + $0x24] sm:$0xf]
    %v259 = vld [vmem:[#allocation8 + $0x28] sm:$0xf]
    %v260 = vld [vmem:[#allocation8 + $0x2c] sm:$0xf]
    %v261 = vld [vmem:[#allocation8 + $0x30] sm:$0xf]
    %v262 = vld [vmem:[#allocation8 + $0x34] sm:$0xf]
    %v263 = vld [vmem:[#allocation8 + $0x38] sm:$0xf]
    %v264 = vld [vmem:[#allocation8 + $0x3c] sm:$0xf]
    %v265 = vld [vmem:[%s5] sm:$0x1]
    %v267 = vlaneseq
    %v268 = vshrl.u32 %v267, 7
    %v269 = vsub.s32 0, %v268
    %v270 = vrot.slane %v265, %v269
    %v288 = vunpack.c.l.b16 %v249
    %v289 = vunpack.c.l.b16 %v250
    %v290 = vunpack.c.l.b16 %v251
    %v291 = vunpack.c.l.b16 %v252
    %v292 = vunpack.c.l.b16 %v253
    %v293 = vunpack.c.l.b16 %v254
    %v294 = vunpack.c.l.b16 %v255
    %v295 = vunpack.c.l.b16 %v256
    %v296 = vunpack.c.l.b16 %v257
    %v297 = vunpack.c.l.b16 %v258
    %v298 = vunpack.c.l.b16 %v259
    %v299 = vunpack.c.l.b16 %v260
    %v300 = vunpack.c.l.b16 %v261
    %v301 = vunpack.c.l.b16 %v262
    %v302 = vunpack.c.l.b16 %v263
    %v303 = vunpack.c.l.b16 %v264
    %v304 = vpack.c.b16 %v289, %v288
    %v305 = vpack.c.b16 %v291, %v290
    %v306 = vpack.c.b16 %v293, %v292
    %v307 = vpack.c.b16 %v295, %v294
    %v308 = vpack.c.b16 %v297, %v296
    %v309 = vpack.c.b16 %v299, %v298
    %v310 = vpack.c.b16 %v301, %v300
    %v311 = vpack.c.b16 %v303, %v302
    %320 = vmatprep.subr.bf16.mxu0 0
    %321 = vmatpush1.bf16.msra.mxu0 %v311
    %322 = vmatprep.subr.bf16.mxu0 0
    %323 = vmatpush1.bf16.msra.mxu0 %v310
    %324 = vmatprep.subr.bf16.mxu0 0
    %325 = vmatpush1.bf16.msra.mxu0 %v309
    %326 = vmatprep.subr.bf16.mxu0 0
    %327 = vmatpush1.bf16.msra.mxu0 %v308
    %328 = vmatprep.subr.bf16.mxu0 0
    %329 = vmatpush1.bf16.msra.mxu0 %v307
    %330 = vmatprep.subr.bf16.mxu0 0
    %331 = vmatpush1.bf16.msra.mxu0 %v306
    %332 = vmatprep.subr.bf16.mxu0 0
    %333 = vmatpush1.bf16.msra.mxu0 %v305
    %334 = vmatprep.subr.bf16.mxu0 0
    %335 = vmatpush1.bf16.msra.mxu0 %v304
    %336 = vmatprep.subr.bf16.mxu0 0
    %337 = vmatpush2.bf16.msra.mxu0 0
    %338 = vmatprep.subr.bf16.mxu0 0
    %339 = vmatpush2.bf16.msra.mxu0 0
    %340 = vmatprep.subr.bf16.mxu0 0
    %341 = vmatpush2.bf16.msra.mxu0 0
    %342 = vmatprep.subr.bf16.mxu0 0
    %343 = vmatpush2.bf16.msra.mxu0 0
    %344 = vmatprep.subr.bf16.mxu0 0
    %345 = vmatpush2.bf16.msra.mxu0 0
    %346 = vmatprep.subr.bf16.mxu0 0
    %347 = vmatpush2.bf16.msra.mxu0 0
    %348 = vmatprep.subr.bf16.mxu0 0
    %349 = vmatpush2.bf16.msra.mxu0 0
    %350 = vmatprep.subr.bf16.mxu0 0
    %351 = vmatpush2.bf16.msra.mxu0 0
    %352 = vmatprep.mubr.bf16.mxu0 0
    %353 = vmatmul.mubr.bf16.gmra.mxu0 %v248
    %v354 = vpop.f32.mrf.mxu0
    %v355 = vadd.f32 %v270, %v354
    %v356 = vpop.f32.mrf.mxu0
    %v357 = vpop.f32.mrf.mxu0
    %v358 = vpop.f32.mrf.mxu0
    %359 = vdwg.mxu0
    %v360 = vlaneseq
    %v361 = vand.u32 %v360, 127
    %vm362 = vcmp.ge.s32.totalorder %v361, 6
    %vm363 = vcmp.lt.s32.totalorder %v361, 10
    %vm364 = vmand %vm362, %vm363
    %v365 = vsel %vm364, %v355, -1e+30
    %366 = vmax.xlane.f32.xlu0 %v365
    %v367 = vpop.xlane.xlu0 %366
    %v368 = vsub.f32 %v365, %v367
    %v369 = vmul.f32 %v368, 1.442695
    %v370 = vpow.pop %v369
    %371 = vadd.xlane.f32.xlu0 %v370
    %v372 = vpop.xlane.xlu0 %371
    %v373 = vlog2.pop %v372
    %v374 = vmul.f32 %v373, 0.6931472
    %v375 = vsub.f32 0.0, %v374
    %vm376 = vcmp.eq.f32.partialorder %v365, %v367
    %v377 = vsub.s32 %v361, 6
    %v378 = vsel %vm376, %v377, 4
    %v379 = vand.u32 %v378, 65535
    %v380 = vshra.s32 %v378, 16
    %v381 = vcvt.s32.f32 %v379
    %v382 = vcvt.s32.f32 %v380
    %383 = vmin.xlane.f32.xlu0 %v382
    %v384 = vpop.xlane.xlu0 %383
    %vm385 = vcmp.eq.f32.partialorder %v382, %v384
    %v386 = vsel %vm385, %v381, inf
    %387 = vmin.xlane.f32.xlu0 %v386
    %v388 = vpop.xlane.xlu0 %387
    %v389 = vcvt.f32.s32 %v388
    %v390 = vcvt.f32.s32 %v384
    %v391 = vshll.u32 %v390, 16
    %v392 = vadd.s32 %v391, %v389
    %vm393 = vcmp.le.s32.totalorder %v361, 5
    %v394 = vsel %vm393, %v355, 0.0
    %vm395 = vcmp.eq.s32.totalorder %v361, 1
    %v396 = vcvt.s32.f32 %v392
    %v397 = vsel %vm395, %v396, %v394
    %vm398 = vcmp.eq.s32.totalorder %v361, 5
    %v399 = vadd.f32 %v397, %v375
    %v400 = vsel %vm398, %v399, %v397
    %401 = vst [vmem:[#allocation10] sm:$0xff] %v400
    // Predicated region
    $region42: #{tpu_custom_call.1} parent=1 // pred_check
      _
    $region43: #{tpu_custom_call.1} parent=1 // pred_check_branch
      %403 = sbr.rel (0) target = $region45
    $region44: #{tpu_custom_call.1} parent=1 // pred_region
      %s405 = ssub.s32 128, 128
      %406 = vsyncadd [#allocation4], %s405
      %s408 = sshll.u32 [#allocation10], 4
      %s409 = int_to_ptr.vmem [resolvable:$true] %s408
      %411 = dma.vmem_to_hbm [thread:$0]  %s409, 128, %s6, [#allocation4]
    $region45: #{tpu_custom_call.1} parent=1 // pred_fallthru
      _
    // Predicated region
    $region46: #{tpu_custom_call.1} parent=1 // pred_check
      _
    $region47: #{tpu_custom_call.1} parent=1 // pred_check_branch
      %413 = sbr.rel (0) target = $region49
    $region48: #{tpu_custom_call.1} parent=1 // pred_region
      %414 = dma.done [#allocation4], 128
    $region49: #{tpu_custom_call.1} parent=1 // pred_fallthru
      _
    %415 = vsyncpa [#allocation3], 1
    %416 = vsyncpa [#allocation6], 1
    %417 = vsyncpa [#allocation9], 1
    %418 = vsyncpa [#allocation4], 1

</llo_original>
